<compile_context>
chip_gen: v7x
topology: tpu7x:2x2x1
jax: 0.10.0
libtpu: 0.0.40
codegen_flags: <defaults>
</compile_context>

<pallas_src>
import math

import jax
import jax.numpy as jnp
from jax.experimental import pallas as pl
from jax.experimental.pallas import tpu as pltpu


def _round_up(x, m):
    return ((x + m - 1) // m) * m


# ---------------------------------------------------------------------------
# One-time parameter preparation (hoisted out of the per-call path).
# ---------------------------------------------------------------------------
def prepare_params(weights, biases, *, lr_mul=1.0):
    """Collapse the purely-affine EqualLinear stack into (W_eff, b_eff), in f32.

    weights[i]: (in_dim_i, out_dim_i) (PyTorch weight transposed);
    biases[i]:  (out_dim_i,).
    Returns W_eff: (len_pose, latent_warp) f32, b_eff: (1, latent_warp) f32.
    """
    hp = jax.lax.Precision.HIGHEST
    w_eff = None
    b_eff = None
    for w, b in zip(weights, biases):
        in_dim = w.shape[0]
        scale = (1.0 / math.sqrt(in_dim)) * lr_mul        # EqualLinear scale
        w_s = w.astype(jnp.float32) * scale               # (in, out), scale folded in
        b_s = jnp.asarray(b, jnp.float32).reshape(-1) * lr_mul
        if w_eff is None:
            w_eff, b_eff = w_s, b_s
        else:
            w_eff = jnp.dot(w_eff, w_s, precision=hp)
            b_eff = jnp.dot(b_eff, w_s, precision=hp) + b_s
    return w_eff, b_eff.reshape(1, -1)


# ---------------------------------------------------------------------------
# Kernel: one (tile_b, len_pose) @ (len_pose, latent_warp) matmul + bias.
# ---------------------------------------------------------------------------
def _pose2latent_kernel(x_ref, w_ref, b_ref, out_ref):
    out_ref[...] = (
        jnp.dot(x_ref[...], w_ref[...], preferred_element_type=jnp.float32)
        + b_ref[...]
    ).astype(out_ref.dtype)


def pose2latent_forward(pose, w_eff, b_eff, *, tile_b=None):
    """pose: (B, len_pose) f32; w_eff: (len_pose, latent_warp); b_eff: (1, latent_warp)."""
    B, len_pose = pose.shape
    latent_warp = w_eff.shape[1]

    # Batch tiling: big tiles amortize per-grid-step overhead (~0.35 us); when B is
    # large enough, keep >= 2 grid steps so v7x's two TensorCores both get work.
    if tile_b is None:
        if B <= 256:
            tile_b = _round_up(max(B, 1), 8)
        else:
            tile_b = min(1024, _round_up(pl.cdiv(B, 2), 256))
    b_pad = _round_up(B, tile_b)
    grid = (b_pad // tile_b,)

    x = pose.astype(jnp.float32)
    if b_pad != B:
        x = jnp.zeros((b_pad, len_pose), jnp.float32).at[:B, :].set(x)

    flops = 2 * b_pad * len_pose * latent_warp
    bytes_accessed = int(
        b_pad * len_pose * 4 + b_pad * latent_warp * 4
        + w_eff.size * 4 + b_eff.size * 4
    )

    out = pl.pallas_call(
        _pose2latent_kernel,
        out_shape=jax.ShapeDtypeStruct((b_pad, latent_warp), jnp.float32),
        grid=grid,
        in_specs=[
            # Activation tiles stream over the batch; feature dim is the full extent
            # (25), so no host-side 128-lane padding is materialized.
            pl.BlockSpec((tile_b, len_pose), lambda i: (i, 0)),
            # Collapsed weight & bias: constant index_map -> DMA'd once, VMEM-resident.
            pl.BlockSpec((len_pose, latent_warp), lambda i: (0, 0)),
            pl.BlockSpec((1, latent_warp), lambda i: (0, 0)),
        ],
        out_specs=pl.BlockSpec((tile_b, latent_warp), lambda i: (i, 0)),
        compiler_params=pltpu.CompilerParams(
            dimension_semantics=("parallel",)),
        cost_estimate=pl.CostEstimate(
            flops=flops, transcendentals=0, bytes_accessed=bytes_accessed),
    )(x, w_eff, b_eff)
    return out[:B]


# ---------------------------------------------------------------------------
# Synthetic init + pure-JAX references (PyTorch semantics).
# ---------------------------------------------------------------------------
def init_params(key, latent_warp=32, len_pose=25, dim=128, lr_mul=1.0):
    """Mirror EqualLinear.__init__: weight = randn(out, in) / lr_mul.

    PyTorch inits biases to bias_init=0; we use small random biases here purely to
    exercise the bias chain.  Weights are returned transposed as (in_dim, out_dim).
    """
    dims = [len_pose, dim, dim, dim, dim, latent_warp]
    weights, biases = [], []
    for i in range(5):
        in_dim, out_dim = dims[i], dims[i + 1]
        key, kw, kb = jax.random.split(key, 3)
        w_pt = jax.random.normal(kw, (out_dim, in_dim), dtype=jnp.float32) / lr_mul
        weights.append(jnp.transpose(w_pt))                  # (in_dim, out_dim)
        biases.append(0.1 * jax.random.normal(kb, (out_dim,), dtype=jnp.float32))
    return weights, biases


def pose2latent_reference_f32(pose, weights, biases, *, lr_mul=1.0):
    """Layer-by-layer f32 reference mirroring the PyTorch forward exactly."""
    hp = jax.lax.Precision.HIGHEST
    h = pose.astype(jnp.float32)
    for w, b in zip(weights, biases):
        scale = (1.0 / math.sqrt(w.shape[0])) * lr_mul
        h = (jnp.dot(h, w.astype(jnp.float32) * scale, precision=hp)
             + jnp.asarray(b, jnp.float32).reshape(1, -1) * lr_mul)
    return h


if __name__ == "__main__":
    key = jax.random.PRNGKey(0)
    key, pk, pk_big = jax.random.split(key, 3)

    # Small shapes consistent with the module: pose is (batch, len_pose).
    batch, len_pose, dim, latent_warp = 2, 25, 128, 32
    pose = jax.random.normal(pk, (batch, len_pose), dtype=jnp.float32)

    weights, biases = init_params(key, latent_warp=latent_warp,
                                  len_pose=len_pose, dim=dim, lr_mul=1.0)

    # One-time host-side collapse of the affine stack (hoisted out of the call path).
    w_eff, b_eff = prepare_params(weights, biases, lr_mul=1.0)
    w_eff = jax.block_until_ready(w_eff)

    fwd = jax.jit(pose2latent_forward)

    # --- small-batch check (single grid step) ---
    out = jax.block_until_ready(fwd(pose, w_eff, b_eff))
    assert out.shape == (batch, latent_warp), out.shape
    ref = pose2latent_reference_f32(pose, weights, biases, lr_mul=1.0)
    err = float(jnp.abs(out - ref).max())
    assert jnp.allclose(out, ref, atol=5e-2, rtol=5e-2), err

    # --- larger-batch check (exercises batch padding and a multi-step grid) ---
    batch_big = 600
    pose_big = jax.random.normal(pk_big, (batch_big, len_pose), dtype=jnp.float32)
    out_big = jax.block_until_ready(fwd(pose_big, w_eff, b_eff))
    assert out_big.shape == (batch_big, latent_warp), out_big.shape
    ref_big = pose2latent_reference_f32(pose_big, weights, biases, lr_mul=1.0)
    err_big = float(jnp.abs(out_big - ref_big).max())
    assert jnp.allclose(out_big, ref_big, atol=5e-2, rtol=5e-2), err_big

    print("KERNEL_OK")
</pallas_src>

<mosaic_0001>
module attributes {stable_mosaic.version = 11 : i64} {
  func.func @_pose2latent_kernel(%arg0: i32, %arg1: memref<8x25xf32, #tpu.memory_space<vmem>>, %arg2: memref<25x32xf32, #tpu.memory_space<vmem>>, %arg3: memref<1x32xf32, #tpu.memory_space<vmem>>, %arg4: memref<8x32xf32, #tpu.memory_space<vmem>>) attributes {dimension_semantics = [#tpu.dimension_semantics<parallel>], iteration_bounds = array<i64: 1>, scalar_prefetch = 0 : i64, scratch_operands = 0 : i64, tpu.core_type = #tpu.core_type<tc>, window_params = [{transform_indices = @transform_0, window_bounds = array<i64: 8, 25>}, {pipeline_mode = #tpu.pipeline_mode<synchronous>, transform_indices = @transform_1, window_bounds = array<i64: 25, 32>}, {pipeline_mode = #tpu.pipeline_mode<synchronous>, transform_indices = @transform_2, window_bounds = array<i64: 1, 32>}, {transform_indices = @transform_3, window_bounds = array<i64: 8, 32>}]} {
    %c0 = arith.constant 0 : index
    %c0_0 = arith.constant 0 : index
    %0 = vector.load %arg1[%c0, %c0_0] : memref<8x25xf32, #tpu.memory_space<vmem>>, vector<8x25xf32>
    %c0_1 = arith.constant 0 : index
    %c0_2 = arith.constant 0 : index
    %1 = vector.load %arg2[%c0_1, %c0_2] : memref<25x32xf32, #tpu.memory_space<vmem>>, vector<25x32xf32>
    %cst = arith.constant dense<0.000000e+00> : vector<8x32xf32>
    %2 = tpu.matmul %0, %1, %cst {dimension_numbers = #tpu.dot_dimension_numbers<[1], [0], [0], [1], [0, 0, 1, 1], [], []>} : vector<8x25xf32>, vector<25x32xf32>, vector<8x32xf32> -> vector<8x32xf32>
    %c0_3 = arith.constant 0 : index
    %c0_4 = arith.constant 0 : index
    %3 = vector.load %arg3[%c0_3, %c0_4] : memref<1x32xf32, #tpu.memory_space<vmem>>, vector<1x32xf32>
    %4 = vector.broadcast %3 : vector<1x32xf32> to vector<8x32xf32>
    %5 = arith.addf %2, %4 : vector<8x32xf32>
    %c0_5 = arith.constant 0 : index
    %c0_6 = arith.constant 0 : index
    %6 = vector.load %arg4[%c0_5, %c0_6] : memref<8x32xf32, #tpu.memory_space<vmem>>, vector<8x32xf32>
    tpu.vector_store %arg4[%c0_5, %c0_6], %5 {strides = array<i32>} : memref<8x32xf32, #tpu.memory_space<vmem>>, vector<8x32xf32>,
    return
  }
  func.func @transform_0(%arg0: i32) -> (i32, i32) {
    %c0_i32 = arith.constant 0 : i32
    %c0_i32_0 = arith.constant 0 : i32
    return %arg0, %c0_i32 : i32, i32
  }
  func.func @transform_1(%arg0: i32) -> (i32, i32) {
    %c0_i32 = arith.constant 0 : i32
    %c0_i32_0 = arith.constant 0 : i32
    %c0_i32_1 = arith.constant 0 : i32
    return %c0_i32, %c0_i32_0 : i32, i32
  }
  func.func @transform_2(%arg0: i32) -> (i32, i32) {
    %c0_i32 = arith.constant 0 : i32
    %c0_i32_0 = arith.constant 0 : i32
    %c0_i32_1 = arith.constant 0 : i32
    return %c0_i32, %c0_i32_0 : i32, i32
  }
  func.func @transform_3(%arg0: i32) -> (i32, i32) {
    %c0_i32 = arith.constant 0 : i32
    %c0_i32_0 = arith.constant 0 : i32
    return %arg0, %c0_i32 : i32, i32
  }
}

</mosaic_0001>

<llo_original>
// kernel: pose2latent_forward.1
$region0: #{pose2latent_forward.1}
  #allocation0 [shape = 'u32[]', space=smem, size = 0x4, offset = 0x4, fixed_abs, tag = 'smem constant byte address 0x4 - core index']
  #allocation1 [shape = 'u32[144,128]{1,0:T(1,128)}', space=vmem, size = 0x12000, scoped, tag = 'internal scratch']
  %s0 = inlined_call_operand.vmem [shape: f32[8,25], index: 0, kind: input, shape index: {}]
  %s1 = inlined_call_operand.hbm [shape: f32[25,32], index: 1, kind: input, shape index: {}]
  %s2 = inlined_call_operand.vmem [shape: f32[1,32], index: 2, kind: input, shape index: {}]
  %s3 = inlined_call_operand.vmem [shape: f32[8,32], index: 3, kind: output, shape index: {}]
  %s4 = sld [smem:[#allocation0]]
  $region26: #{pose2latent_forward.1} parent=0
    _
  %s6 = ssub.s32 1, %s4
  %s7 = scalar_select 0, %s6, %s4
  $region1: #{pose2latent_forward.1} parent=0
    #allocation2 [shape = 'u8[16384]{0}', space=vmem, size = 0x4000, scoped, tag = 'input window, operand 1, single buffered']
    #allocation3 [shape = 's32[1]{0}', space=sflag, size = 0x4, scoped, tag = 'scoped memory for pose2latent_forward.1']
    %8 = vsyncpa [#allocation3], 0
    // Predicated region
    $region2: #{pose2latent_forward.1} parent=1 // pred_check
      _
    $region3: #{pose2latent_forward.1} parent=1 // pred_check_branch
      %10 = sbr.rel (0) target = $region5
    $region4: #{pose2latent_forward.1} parent=1 // pred_region
      _
    $region5: #{pose2latent_forward.1} parent=1 // pred_fallthru
      _
    // Predicated region
    $region6: #{pose2latent_forward.1} parent=1 // pred_check
      _
    $region7: #{pose2latent_forward.1} parent=1 // pred_check_branch
      %12 = sbr.rel (0) target = $region9
    $region8: #{pose2latent_forward.1} parent=1 // pred_region
      %s14 = ssub.s32 512, 512
      %15 = vsyncadd [#allocation3], %s14
      %s16 = sshll.u32 [#allocation2], 4
      %s17 = int_to_ptr.vmem [resolvable:$true] %s16
      %22 = dma.hbm_to_vmem [thread:$0]  %s1, 512, %s17, [#allocation3], 128, 128, 8
    $region9: #{pose2latent_forward.1} parent=1 // pred_fallthru
      _
    // Predicated region
    $region10: #{pose2latent_forward.1} parent=1 // pred_check
      _
    $region11: #{pose2latent_forward.1} parent=1 // pred_check_branch
      %24 = sbr.rel (0) target = $region13
    $region12: #{pose2latent_forward.1} parent=1 // pred_region
      _
    $region13: #{pose2latent_forward.1} parent=1 // pred_fallthru
      _
    // Predicated region
    $region14: #{pose2latent_forward.1} parent=1 // pred_check
      _
    $region15: #{pose2latent_forward.1} parent=1 // pred_check_branch
      %26 = sbr.rel (0) target = $region17
    $region16: #{pose2latent_forward.1} parent=1 // pred_region
      %27 = dma.done [#allocation3], 512
    $region17: #{pose2latent_forward.1} parent=1 // pred_fallthru
      _
    %v28 = vld [vmem:[%s0] sm:$0xff]
    %v29 = vld [vmem:[#allocation2] sm:$0xff]
    %v30 = vld [vmem:[#allocation2 + $0x8] sm:$0xff]
    %v31 = vld [vmem:[#allocation2 + $0x10] sm:$0xff]
    %v32 = vld [vmem:[#allocation2 + $0x18] sm:$0x1]
    %v33 = vld [vmem:[%s2] sm:$0x1]
    %v35 = vlaneseq
    %v36 = vshrl.u32 %v35, 7
    %v37 = vsub.s32 0, %v36
    %v38 = vrot.slane %v33, %v37
    %vm40 = vcmask 203776
    %v42 = vsel %vm40, %v28, 0
    %vm44 = vcmask 1040384
    %v46 = vsel %vm44, %v32, 0
    %48 = vmatprep.subr.mxu0 0.0
    %49 = vmatpush1.msra.mxu0 %v29
    %50 = vmatprep.subr.mxu0 0.0
    %51 = vmatpush1.msra.mxu0 %v30
    %52 = vmatprep.subr.mxu0 0.0
    %53 = vmatpush1.msra.mxu0 %v31
    %54 = vmatprep.subr.mxu0 0.0
    %55 = vmatpush1.msra.mxu0 %v46
    %56 = vmatprep.subr.mxu0 0.0
    %57 = vmatpush1.msra.mxu0 0.0
    %58 = vmatprep.subr.mxu0 0.0
    %59 = vmatpush1.msra.mxu0 0.0
    %60 = vmatprep.subr.mxu0 0.0
    %61 = vmatpush1.msra.mxu0 0.0
    %62 = vmatprep.subr.mxu0 0.0
    %63 = vmatpush1.msra.mxu0 0.0
    %64 = vmatprep.subr.mxu0 0.0
    %65 = vmatpush1.msra.mxu0 0.0
    %66 = vmatprep.subr.mxu0 0.0
    %67 = vmatpush1.msra.mxu0 0.0
    %68 = vmatprep.subr.mxu0 0.0
    %69 = vmatpush1.msra.mxu0 0.0
    %70 = vmatprep.subr.mxu0 0.0
    %71 = vmatpush1.msra.mxu0 0.0
    %72 = vmatprep.subr.mxu0 0.0
    %73 = vmatpush1.msra.mxu0 0.0
    %74 = vmatprep.subr.mxu0 0.0
    %75 = vmatpush1.msra.mxu0 0.0
    %76 = vmatprep.subr.mxu0 0.0
    %77 = vmatpush1.msra.mxu0 0.0
    %78 = vmatprep.subr.mxu0 0.0
    %79 = vmatpush1.msra.mxu0 0.0
    %80 = vmatprep.subr.mxu0 0.0
    %81 = vmatpush1.msra.mxu0 0.0
    %82 = vmatprep.subr.mxu0 0.0
    %83 = vmatpush1.msra.mxu0 0.0
    %84 = vmatprep.subr.mxu0 0.0
    %85 = vmatpush1.msra.mxu0 0.0
    %86 = vmatprep.subr.mxu0 0.0
    %87 = vmatpush1.msra.mxu0 0.0
    %88 = vmatprep.subr.mxu0 0.0
    %89 = vmatpush1.msra.mxu0 0.0
    %90 = vmatprep.subr.mxu0 0.0
    %91 = vmatpush1.msra.mxu0 0.0
    %92 = vmatprep.subr.mxu0 0.0
    %93 = vmatpush1.msra.mxu0 0.0
    %94 = vmatprep.subr.mxu0 0.0
    %95 = vmatpush1.msra.mxu0 0.0
    %96 = vmatprep.subr.mxu0 0.0
    %97 = vmatpush1.msra.mxu0 0.0
    %98 = vmatprep.subr.mxu0 0.0
    %99 = vmatpush1.msra.mxu0 0.0
    %100 = vmatprep.subr.mxu0 0.0
    %101 = vmatpush1.msra.mxu0 0.0
    %102 = vmatprep.subr.mxu0 0.0
    %103 = vmatpush1.msra.mxu0 0.0
    %104 = vmatprep.subr.mxu0 0.0
    %105 = vmatpush1.msra.mxu0 0.0
    %106 = vmatprep.subr.mxu0 0.0
    %107 = vmatpush1.msra.mxu0 0.0
    %108 = vmatprep.subr.mxu0 0.0
    %109 = vmatpush1.msra.mxu0 0.0
    %110 = vmatprep.subr.mxu0 0.0
    %111 = vmatpush1.msra.mxu0 0.0
    %112 = vmatprep.mubr.f32.mxu0 0.0
    %113 = vmatmul.mubr.f32.gmra.mrb[0].mxu0 %v42
    %v114 = vpop.f32.mrb[0].mxu0
    %v115 = vadd.f32 %v38, %v114
    %v116 = vpop.f32.mrb[0].mxu0
    %117 = vdwg.mxu0
    %vm118 = vcmask 261120
    %119 = vst.msk [vmem:[%s3] sm:$0xff] %vm118, %v115
    // Predicated region
    $region18: #{pose2latent_forward.1} parent=1 // pred_check
      _
    $region19: #{pose2latent_forward.1} parent=1 // pred_check_branch
      %121 = sbr.rel (0) target = $region21
    $region20: #{pose2latent_forward.1} parent=1 // pred_region
      _
    $region21: #{pose2latent_forward.1} parent=1 // pred_fallthru
      _
    // Predicated region
    $region22: #{pose2latent_forward.1} parent=1 // pred_check
      _
    $region23: #{pose2latent_forward.1} parent=1 // pred_check_branch
      %123 = sbr.rel (0) target = $region25
    $region24: #{pose2latent_forward.1} parent=1 // pred_region
      _
    $region25: #{pose2latent_forward.1} parent=1 // pred_fallthru
      _
    %124 = vsyncpa [#allocation3], 1

</llo_original>
